<compile_context>
chip_gen: v7x
topology: tpu7x:2x2x1
jax: 0.10.0
libtpu: 0.0.40
codegen_flags: <defaults>
</compile_context>

<pallas_src>
import jax
import jax.numpy as jnp
from jax import lax
from jax.experimental import pallas as pl
from jax.experimental.pallas import tpu as pltpu


def _bit_len(n: int) -> int:
    return n.bit_length()


VOCAB_LEN = 3                        # ['(', ')', 'arg']
IN_SIZE = 40 * _bit_len(VOCAB_LEN)   # 80 (multiple of 8/16 -> no feature padding)
HIDDEN = 100
OUT_SIZE = 1
HID_PAD = 128                        # hidden width padded to the 128-lane boundary


def _round_up(x: int, m: int) -> int:
    return ((x + m - 1) // m) * m


def _mlp_kernel(x_ref,
                w1_ref, b1_ref,
                w2_ref, b2_ref,
                w3_ref, b3_ref,
                w4t_ref, b4_ref,
                o_ref):
    """Fused 4-layer MLP forward for one batch tile; activations never leave VMEM.

    x_ref:   (block_b, IN_SIZE)    compute dtype (f32 or bf16)
    w1_ref:  (IN_SIZE, HID_PAD)    compute dtype
    w2/3:    (HID_PAD, HID_PAD)    compute dtype
    w4t_ref: (1, HID_PAD)          compute dtype (transposed final weight)
    b1/2/3:  (1, HID_PAD) f32      b4_ref: (1, 1) f32 scalar in SMEM
    o_ref:   (1, 1, block_b) f32   lane-dense packed sigmoid outputs
    """
    x = x_ref[...]

    # Linear(80 -> 100) + ReLU   (output dim zero-padded to 128; K stays 80)
    h = jnp.dot(x, w1_ref[...], preferred_element_type=jnp.float32) + b1_ref[...]
    h = jnp.maximum(h, 0.0)

    # Linear(100 -> 100) + Tanh
    h = jnp.dot(h.astype(w2_ref.dtype), w2_ref[...],
                preferred_element_type=jnp.float32) + b2_ref[...]
    h = jnp.tanh(h)

    # Linear(100 -> 100) + ReLU
    h = jnp.dot(h.astype(w3_ref.dtype), w3_ref[...],
                preferred_element_type=jnp.float32) + b3_ref[...]
    h = jnp.maximum(h, 0.0)

    # Linear(100 -> 1) + Sigmoid, computed transposed so the per-row scalar
    # outputs land lane-dense as a (1, block_b) vector (no masked width-1 stores,
    # no 128x output write amplification).  Transpose runs on the idle XLU.
    ht = h.T.astype(w4t_ref.dtype)                         # (HID_PAD, block_b)
    zt = jnp.dot(w4t_ref[...], ht,
                 preferred_element_type=jnp.float32)       # (1, block_b)
    zt = zt + b4_ref[0, 0]
    o_ref[0] = jax.nn.sigmoid(zt).astype(o_ref.dtype)


def _default_block_b(batch: int) -> int:
    # Multiples of 128 keep the packed (1, block_b) output lane-aligned.
    # Big tiles amortize the ~0.35us/grid-step overhead; keep >=2 grid steps when
    # the batch is large enough so the "parallel" axis can use both TCs on v7x.
    if batch <= 512:
        return _round_up(max(batch, 1), 128)
    return int(min(2048, _round_up(pl.cdiv(batch, 2), 128)))


def net_forward(x, padded_params, *, block_b=None, compute_dtype=jnp.bfloat16):
    """x: (B, IN_SIZE). padded_params from pad_params(). Returns (B, 1) f32 probs.

    compute_dtype controls the dtype of x / weights streamed from HBM (bf16 by
    default to halve DMA traffic); accumulation and inter-layer activations are f32.
    """
    (w1, b1), (w2, b2), (w3, b3), (w4t, b4) = padded_params
    B, feat = x.shape
    assert feat == IN_SIZE

    if block_b is None:
        block_b = _default_block_b(B)
    grid_b = pl.cdiv(B, block_b)
    b_pad = grid_b * block_b

    # Keep the natural 80-wide feature dim; pad only the batch remainder tile.
    x_in = x.astype(compute_dtype)
    if b_pad != B:
        x_in = jnp.pad(x_in, ((0, b_pad - B), (0, 0)))

    def resident(arr):
        # Constant index_map -> fetched once, stays resident in VMEM across steps.
        return pl.BlockSpec(arr.shape, lambda i: (0, 0))

    out = pl.pallas_call(
        _mlp_kernel,
        out_shape=jax.ShapeDtypeStruct((grid_b, 1, block_b), jnp.float32),
        grid=(grid_b,),
        in_specs=[
            pl.BlockSpec((block_b, IN_SIZE), lambda i: (i, 0)),
            resident(w1), resident(b1),
            resident(w2), resident(b2),
            resident(w3), resident(b3),
            resident(w4t),
            pl.BlockSpec(memory_space=pltpu.MemorySpace.SMEM),   # b4 scalar
        ],
        out_specs=pl.BlockSpec((1, 1, block_b), lambda i: (i, 0, 0)),
        compiler_params=pltpu.CompilerParams(
            dimension_semantics=("parallel",)),
    )(x_in, w1, b1, w2, b2, w3, b3, w4t, b4)

    # (grid_b, 1, block_b) -> (b_pad, 1) is a free contiguous reshape; trim pad rows.
    return out.reshape(b_pad, 1)[:B]


def init_params(key):
    """Unpadded params, PyTorch nn.Linear default init:
    U(-1/sqrt(fan_in), 1/sqrt(fan_in)) for both weight and bias.
    Weights stored as (in, out) so forward is x @ W + b."""
    dims = [(IN_SIZE, HIDDEN), (HIDDEN, HIDDEN), (HIDDEN, HIDDEN), (HIDDEN, OUT_SIZE)]
    params = []
    for fan_in, fan_out in dims:
        key, kw, kb = jax.random.split(key, 3)
        bound = 1.0 / (fan_in ** 0.5)
        w = jax.random.uniform(kw, (fan_in, fan_out), jnp.float32, -bound, bound)
        b = jax.random.uniform(kb, (1, fan_out), jnp.float32, -bound, bound)
        params.append((w, b))
    return params


def pad_params(params, weight_dtype=jnp.bfloat16):
    """Pad params to TPU-friendly shapes. Padded rows/cols are exactly zero
    (including biases), so padded hidden units stay identically zero through
    ReLU/tanh and contribute nothing -> results match the unpadded network.

      w1: (80,100)  -> (80,128)    (input dim NOT padded)
      w2,w3: (100,100) -> (128,128)
      w4: (100,1)   -> transposed to (1,128)
      b1..b3: (1,100) -> (1,128) f32; b4 -> (1,1) f32 (SMEM scalar)
    """
    (w1, b1), (w2, b2), (w3, b3), (w4, b4) = params

    def pad_to(a, shape, dtype):
        out = jnp.zeros(shape, dtype)
        return out.at[:a.shape[0], :a.shape[1]].set(a.astype(dtype))

    w1p = pad_to(w1, (IN_SIZE, HID_PAD), weight_dtype)
    w2p = pad_to(w2, (HID_PAD, HID_PAD), weight_dtype)
    w3p = pad_to(w3, (HID_PAD, HID_PAD), weight_dtype)
    w4tp = pad_to(w4.T, (1, HID_PAD), weight_dtype)          # transposed final layer
    b1p = pad_to(b1, (1, HID_PAD), jnp.float32)
    b2p = pad_to(b2, (1, HID_PAD), jnp.float32)
    b3p = pad_to(b3, (1, HID_PAD), jnp.float32)
    b4p = b4.reshape(1, 1).astype(jnp.float32)
    return (w1p, b1p), (w2p, b2p), (w3p, b3p), (w4tp, b4p)


def reference_forward(x, params):
    """Pure-JAX reference (unpadded, highest matmul precision)."""
    (w1, b1), (w2, b2), (w3, b3), (w4, b4) = params
    dot = lambda a, b: jnp.dot(a, b, precision=lax.Precision.HIGHEST)
    h = jnp.maximum(dot(x, w1) + b1, 0.0)
    h = jnp.tanh(dot(h, w2) + b2)
    h = jnp.maximum(dot(h, w3) + b3, 0.0)
    return jax.nn.sigmoid(dot(h, w4) + b4)


if __name__ == "__main__":
    key = jax.random.PRNGKey(0)
    key, kx = jax.random.split(key)

    B = 8
    x = jax.random.normal(kx, (B, IN_SIZE), jnp.float32)

    params = init_params(key)
    ref = reference_forward(x, params)

    # f32 path (tight tolerance).
    out_f32 = net_forward(x, pad_params(params, weight_dtype=jnp.float32),
                          compute_dtype=jnp.float32)
    out_f32 = jax.block_until_ready(out_f32)
    assert out_f32.shape == (B, OUT_SIZE)
    assert jnp.allclose(out_f32, ref, atol=2e-3, rtol=2e-3), "f32 path mismatch"

    # Default bf16-streaming path (memory-bound deployments on v5e/v6e/v7x).
    out_bf16 = net_forward(x, pad_params(params))
    out_bf16 = jax.block_until_ready(out_bf16)
    assert out_bf16.shape == (B, OUT_SIZE)
    assert jnp.allclose(out_bf16, ref, atol=3e-2), "bf16 path mismatch"

    print("KERNEL_OK")
</pallas_src>

<mosaic_0001>
module attributes {stable_mosaic.version = 11 : i64} {
  func.func @_mlp_kernel(%arg0: i32, %arg1: memref<128x80xf32, #tpu.memory_space<vmem>>, %arg2: memref<80x128xf32, #tpu.memory_space<vmem>>, %arg3: memref<1x128xf32, #tpu.memory_space<vmem>>, %arg4: memref<128x128xf32, #tpu.memory_space<vmem>>, %arg5: memref<1x128xf32, #tpu.memory_space<vmem>>, %arg6: memref<128x128xf32, #tpu.memory_space<vmem>>, %arg7: memref<1x128xf32, #tpu.memory_space<vmem>>, %arg8: memref<1x128xf32, #tpu.memory_space<vmem>>, %arg9: memref<1x1xf32, #tpu.memory_space<smem>>, %arg10: memref<1x1x128xf32, #tpu.memory_space<vmem>>) attributes {dimension_semantics = [#tpu.dimension_semantics<parallel>], iteration_bounds = array<i64: 1>, scalar_prefetch = 0 : i64, scratch_operands = 0 : i64, tpu.core_type = #tpu.core_type<tc>, window_params = [{transform_indices = @transform_0, window_bounds = array<i64: 128, 80>}, {pipeline_mode = #tpu.pipeline_mode<synchronous>, transform_indices = @transform_1, window_bounds = array<i64: 80, 128>}, {pipeline_mode = #tpu.pipeline_mode<synchronous>, transform_indices = @transform_2, window_bounds = array<i64: 1, 128>}, {pipeline_mode = #tpu.pipeline_mode<synchronous>, transform_indices = @transform_3, window_bounds = array<i64: 128, 128>}, {pipeline_mode = #tpu.pipeline_mode<synchronous>, transform_indices = @transform_4, window_bounds = array<i64: 1, 128>}, {pipeline_mode = #tpu.pipeline_mode<synchronous>, transform_indices = @transform_5, window_bounds = array<i64: 128, 128>}, {pipeline_mode = #tpu.pipeline_mode<synchronous>, transform_indices = @transform_6, window_bounds = array<i64: 1, 128>}, {pipeline_mode = #tpu.pipeline_mode<synchronous>, transform_indices = @transform_7, window_bounds = array<i64: 1, 128>}, {transform_indices = @transform_8, window_bounds = array<i64: 1, 1>}, {transform_indices = @transform_9, window_bounds = array<i64: 1, 1, 128>}]} {
    %c0 = arith.constant 0 : index
    %c0_0 = arith.constant 0 : index
    %0 = vector.load %arg1[%c0, %c0_0] : memref<128x80xf32, #tpu.memory_space<vmem>>, vector<128x80xf32>
    %c0_1 = arith.constant 0 : index
    %c0_2 = arith.constant 0 : index
    %1 = vector.load %arg2[%c0_1, %c0_2] : memref<80x128xf32, #tpu.memory_space<vmem>>, vector<80x128xf32>
    %cst = arith.constant dense<0.000000e+00> : vector<128x128xf32>
    %2 = tpu.matmul %0, %1, %cst {dimension_numbers = #tpu.dot_dimension_numbers<[1], [0], [0], [1], [0, 0, 1, 1], [], []>} : vector<128x80xf32>, vector<80x128xf32>, vector<128x128xf32> -> vector<128x128xf32>
    %c0_3 = arith.constant 0 : index
    %c0_4 = arith.constant 0 : index
    %3 = vector.load %arg3[%c0_3, %c0_4] : memref<1x128xf32, #tpu.memory_space<vmem>>, vector<1x128xf32>
    %4 = vector.broadcast %3 : vector<1x128xf32> to vector<128x128xf32>
    %5 = arith.addf %2, %4 : vector<128x128xf32>
    %cst_5 = arith.constant 0.000000e+00 : f32
    %6 = vector.broadcast %cst_5 : f32 to vector<128x128xf32>
    %7 = arith.maximumf %5, %6 : vector<128x128xf32>
    %c0_6 = arith.constant 0 : index
    %c0_7 = arith.constant 0 : index
    %8 = vector.load %arg4[%c0_6, %c0_7] : memref<128x128xf32, #tpu.memory_space<vmem>>, vector<128x128xf32>
    %cst_8 = arith.constant dense<0.000000e+00> : vector<128x128xf32>
    %9 = tpu.matmul %7, %8, %cst_8 {dimension_numbers = #tpu.dot_dimension_numbers<[1], [0], [0], [1], [0, 0, 1, 1], [], []>} : vector<128x128xf32>, vector<128x128xf32>, vector<128x128xf32> -> vector<128x128xf32>
    %c0_9 = arith.constant 0 : index
    %c0_10 = arith.constant 0 : index
    %10 = vector.load %arg5[%c0_9, %c0_10] : memref<1x128xf32, #tpu.memory_space<vmem>>, vector<1x128xf32>
    %11 = vector.broadcast %10 : vector<1x128xf32> to vector<128x128xf32>
    %12 = arith.addf %9, %11 : vector<128x128xf32>
    %13 = math.tanh %12 : vector<128x128xf32>
    %c0_11 = arith.constant 0 : index
    %c0_12 = arith.constant 0 : index
    %14 = vector.load %arg6[%c0_11, %c0_12] : memref<128x128xf32, #tpu.memory_space<vmem>>, vector<128x128xf32>
    %cst_13 = arith.constant dense<0.000000e+00> : vector<128x128xf32>
    %15 = tpu.matmul %13, %14, %cst_13 {dimension_numbers = #tpu.dot_dimension_numbers<[1], [0], [0], [1], [0, 0, 1, 1], [], []>} : vector<128x128xf32>, vector<128x128xf32>, vector<128x128xf32> -> vector<128x128xf32>
    %c0_14 = arith.constant 0 : index
    %c0_15 = arith.constant 0 : index
    %16 = vector.load %arg7[%c0_14, %c0_15] : memref<1x128xf32, #tpu.memory_space<vmem>>, vector<1x128xf32>
    %17 = vector.broadcast %16 : vector<1x128xf32> to vector<128x128xf32>
    %18 = arith.addf %15, %17 : vector<128x128xf32>
    %cst_16 = arith.constant 0.000000e+00 : f32
    %19 = vector.broadcast %cst_16 : f32 to vector<128x128xf32>
    %20 = arith.maximumf %18, %19 : vector<128x128xf32>
    %21 = tpu.transpose %20, [1, 0] : vector<128x128xf32> -> vector<128x128xf32>
    %c0_17 = arith.constant 0 : index
    %c0_18 = arith.constant 0 : index
    %22 = vector.load %arg8[%c0_17, %c0_18] : memref<1x128xf32, #tpu.memory_space<vmem>>, vector<1x128xf32>
    %cst_19 = arith.constant dense<0.000000e+00> : vector<1x128xf32>
    %23 = tpu.matmul %22, %21, %cst_19 {dimension_numbers = #tpu.dot_dimension_numbers<[1], [0], [0], [1], [0, 0, 1, 1], [], []>} : vector<1x128xf32>, vector<128x128xf32>, vector<1x128xf32> -> vector<1x128xf32>
    %c0_20 = arith.constant 0 : index
    %c0_21 = arith.constant 0 : index
    %24 = memref.load %arg9[%c0_20, %c0_21] : memref<1x1xf32, #tpu.memory_space<smem>>
    %25 = vector.broadcast %24 : f32 to vector<1x128xf32>
    %26 = arith.addf %23, %25 : vector<1x128xf32>
    %27 = arith.negf %26 : vector<1x128xf32>
    %28 = math.exp %27 : vector<1x128xf32>
    %cst_22 = arith.constant 1.000000e+00 : f32
    %29 = vector.broadcast %cst_22 : f32 to vector<1x128xf32>
    %30 = arith.addf %29, %28 : vector<1x128xf32>
    %31 = arith.divf %29, %30 : vector<1x128xf32>
    %c0_23 = arith.constant 0 : index
    %c0_24 = arith.constant 0 : index
    %c0_25 = arith.constant 0 : index
    %32 = vector.load %arg10[%c0_23, %c0_24, %c0_25] : memref<1x1x128xf32, #tpu.memory_space<vmem>>, vector<1x1x128xf32>
    %33 = vector.shape_cast %32 : vector<1x1x128xf32> to vector<1x128xf32>
    %34 = vector.shape_cast %31 : vector<1x128xf32> to vector<1x1x128xf32>
    tpu.vector_store %arg10[%c0_23, %c0_24, %c0_25], %34 {strides = array<i32>} : memref<1x1x128xf32, #tpu.memory_space<vmem>>, vector<1x1x128xf32>,
    return
  }
  func.func @transform_0(%arg0: i32) -> (i32, i32) {
    %c0_i32 = arith.constant 0 : i32
    %c0_i32_0 = arith.constant 0 : i32
    return %arg0, %c0_i32 : i32, i32
  }
  func.func @transform_1(%arg0: i32) -> (i32, i32) {
    %c0_i32 = arith.constant 0 : i32
    %c0_i32_0 = arith.constant 0 : i32
    %c0_i32_1 = arith.constant 0 : i32
    return %c0_i32, %c0_i32_0 : i32, i32
  }
  func.func @transform_2(%arg0: i32) -> (i32, i32) {
    %c0_i32 = arith.constant 0 : i32
    %c0_i32_0 = arith.constant 0 : i32
    %c0_i32_1 = arith.constant 0 : i32
    return %c0_i32, %c0_i32_0 : i32, i32
  }
  func.func @transform_3(%arg0: i32) -> (i32, i32) {
    %c0_i32 = arith.constant 0 : i32
    %c0_i32_0 = arith.constant 0 : i32
    %c0_i32_1 = arith.constant 0 : i32
    return %c0_i32, %c0_i32_0 : i32, i32
  }
  func.func @transform_4(%arg0: i32) -> (i32, i32) {
    %c0_i32 = arith.constant 0 : i32
    %c0_i32_0 = arith.constant 0 : i32
    %c0_i32_1 = arith.constant 0 : i32
    return %c0_i32, %c0_i32_0 : i32, i32
  }
  func.func @transform_5(%arg0: i32) -> (i32, i32) {
    %c0_i32 = arith.constant 0 : i32
    %c0_i32_0 = arith.constant 0 : i32
    %c0_i32_1 = arith.constant 0 : i32
    return %c0_i32, %c0_i32_0 : i32, i32
  }
  func.func @transform_6(%arg0: i32) -> (i32, i32) {
    %c0_i32 = arith.constant 0 : i32
    %c0_i32_0 = arith.constant 0 : i32
    %c0_i32_1 = arith.constant 0 : i32
    return %c0_i32, %c0_i32_0 : i32, i32
  }
  func.func @transform_7(%arg0: i32) -> (i32, i32) {
    %c0_i32 = arith.constant 0 : i32
    %c0_i32_0 = arith.constant 0 : i32
    %c0_i32_1 = arith.constant 0 : i32
    return %c0_i32, %c0_i32_0 : i32, i32
  }
  func.func @transform_8(%arg0: i32) -> (i32, i32) {
    %c0_i32 = arith.constant 0 : i32
    %c0_i32_0 = arith.constant 0 : i32
    %c0_i32_1 = arith.constant 0 : i32
    return %c0_i32, %c0_i32_0 : i32, i32
  }
  func.func @transform_9(%arg0: i32) -> (i32, i32, i32) {
    %c0_i32 = arith.constant 0 : i32
    %c0_i32_0 = arith.constant 0 : i32
    %c0_i32_1 = arith.constant 0 : i32
    return %arg0, %c0_i32, %c0_i32_0 : i32, i32, i32
  }
}

</mosaic_0001>

<llo_original>
// kernel: tpu_custom_call.1
$region0: #{tpu_custom_call.1}
  #allocation0 [shape = 'u32[]', space=smem, size = 0x4, offset = 0x4, fixed_abs, tag = 'smem constant byte address 0x4 - core index']
  #allocation1 [shape = 'u32[144,128]{1,0:T(1,128)}', space=vmem, size = 0x12000, scoped, tag = 'internal scratch']
  #allocation2 [shape = 'f32[1,1]{1,0:T(1,128)S(6)}', space=smem, size = 0x200, scoped, tag = 'scoped memory for tpu_custom_call.1']
  %s0 = inlined_call_operand.vmem [shape: f32[128,80], index: 0, kind: input, shape index: {}]
  %s1 = inlined_call_operand.vmem [shape: f32[80,128], index: 1, kind: input, shape index: {}]
  %s2 = inlined_call_operand.vmem [shape: f32[1,128], index: 2, kind: input, shape index: {}]
  %s3 = inlined_call_operand.vmem [shape: f32[128,128], index: 3, kind: input, shape index: {}]
  %s4 = inlined_call_operand.vmem [shape: f32[1,128], index: 4, kind: input, shape index: {}]
  %s5 = inlined_call_operand.hbm [shape: f32[128,128], index: 5, kind: input, shape index: {}]
  %s6 = inlined_call_operand.vmem [shape: f32[1,128], index: 6, kind: input, shape index: {}]
  %s7 = inlined_call_operand.vmem [shape: f32[1,128], index: 7, kind: input, shape index: {}]
  %s8 = inlined_call_operand.<no memory space> [shape: f32[1,1], index: 8, kind: input, shape index: {}]
  %s9 = inlined_call_operand.hbm [shape: f32[1,1,128], index: 9, kind: output, shape index: {}]
  %s10 = sld [smem:[#allocation0]]
  $region50: #{tpu_custom_call.1} parent=0
    _
  %s12 = ssub.s32 1, %s10
  %s13 = scalar_select 0, %s12, %s10
  %14 = sst [smem:[#allocation2]] %s8
  $region1: #{tpu_custom_call.1} parent=0
    #allocation3 [shape = 'u8[65536]{0}', space=vmem, size = 0x10000, scoped, tag = 'input window, operand 5, single buffered']
    #allocation4 [shape = 's32[1]{0}', space=sflag, size = 0x4, scoped, tag = 'scoped memory for tpu_custom_call.1']
    #allocation5 [shape = 's32[1]{0}', space=sflag, size = 0x4, scoped, tag = 'scoped memory for tpu_custom_call.1']
    #allocation6 [shape = 'u8[512]{0}', space=vmem, size = 0x400, scoped, tag = 'output window, operand 0, single buffered']
    %15 = vsyncpa [#allocation4], 0
    %16 = vsyncpa [#allocation5], 0
    // Predicated region
    $region2: #{tpu_custom_call.1} parent=1 // pred_check
      _
    $region3: #{tpu_custom_call.1} parent=1 // pred_check_branch
      %18 = sbr.rel (0) target = $region5
    $region4: #{tpu_custom_call.1} parent=1 // pred_region
      _
    $region5: #{tpu_custom_call.1} parent=1 // pred_fallthru
      _
    // Predicated region
    $region6: #{tpu_custom_call.1} parent=1 // pred_check
      _
    $region7: #{tpu_custom_call.1} parent=1 // pred_check_branch
      %20 = sbr.rel (0) target = $region9
    $region8: #{tpu_custom_call.1} parent=1 // pred_region
      _
    $region9: #{tpu_custom_call.1} parent=1 // pred_fallthru
      _
    // Predicated region
    $region10: #{tpu_custom_call.1} parent=1 // pred_check
      _
    $region11: #{tpu_custom_call.1} parent=1 // pred_check_branch
      %22 = sbr.rel (0) target = $region13
    $region12: #{tpu_custom_call.1} parent=1 // pred_region
      _
    $region13: #{tpu_custom_call.1} parent=1 // pred_fallthru
      _
    // Predicated region
    $region14: #{tpu_custom_call.1} parent=1 // pred_check
      _
    $region15: #{tpu_custom_call.1} parent=1 // pred_check_branch
      %24 = sbr.rel (0) target = $region17
    $region16: #{tpu_custom_call.1} parent=1 // pred_region
      _
    $region17: #{tpu_custom_call.1} parent=1 // pred_fallthru
      _
    // Predicated region
    $region18: #{tpu_custom_call.1} parent=1 // pred_check
      _
    $region19: #{tpu_custom_call.1} parent=1 // pred_check_branch
      %26 = sbr.rel (0) target = $region21
    $region20: #{tpu_custom_call.1} parent=1 // pred_region
      _
    $region21: #{tpu_custom_call.1} parent=1 // pred_fallthru
      _
    // Predicated region
    $region22: #{tpu_custom_call.1} parent=1 // pred_check
      _
    $region23: #{tpu_custom_call.1} parent=1 // pred_check_branch
      %28 = sbr.rel (0) target = $region25
    $region24: #{tpu_custom_call.1} parent=1 // pred_region
      %s30 = ssub.s32 2048, 2048
      %31 = vsyncadd [#allocation4], %s30
      %s32 = sshll.u32 [#allocation3], 4
      %s33 = int_to_ptr.vmem [resolvable:$true] %s32
      %38 = dma.hbm_to_vmem [thread:$0]  %s5, 2048, %s33, [#allocation4], 128, 128, 8
    $region25: #{tpu_custom_call.1} parent=1 // pred_fallthru
      _
    // Predicated region
    $region26: #{tpu_custom_call.1} parent=1 // pred_check
      _
    $region27: #{tpu_custom_call.1} parent=1 // pred_check_branch
      %40 = sbr.rel (0) target = $region29
    $region28: #{tpu_custom_call.1} parent=1 // pred_region
      _
    $region29: #{tpu_custom_call.1} parent=1 // pred_fallthru
      _
    // Predicated region
    $region30: #{tpu_custom_call.1} parent=1 // pred_check
      _
    $region31: #{tpu_custom_call.1} parent=1 // pred_check_branch
      %42 = sbr.rel (0) target = $region33
    $region32: #{tpu_custom_call.1} parent=1 // pred_region
      _
    $region33: #{tpu_custom_call.1} parent=1 // pred_fallthru
      _
    // Predicated region
    $region34: #{tpu_custom_call.1} parent=1 // pred_check
      _
    $region35: #{tpu_custom_call.1} parent=1 // pred_check_branch
      %44 = sbr.rel (0) target = $region37
    $region36: #{tpu_custom_call.1} parent=1 // pred_region
      _
    $region37: #{tpu_custom_call.1} parent=1 // pred_fallthru
      _
    // Predicated region
    $region38: #{tpu_custom_call.1} parent=1 // pred_check
      _
    $region39: #{tpu_custom_call.1} parent=1 // pred_check_branch
      %46 = sbr.rel (0) target = $region41
    $region40: #{tpu_custom_call.1} parent=1 // pred_region
      %47 = dma.done [#allocation4], 2048
    $region41: #{tpu_custom_call.1} parent=1 // pred_fallthru
      _
    %v48 = vld [vmem:[%s0] sm:$0xff]
    %v49 = vld [vmem:[%s0 + $0x8] sm:$0xff]
    %v50 = vld [vmem:[%s0 + $0x10] sm:$0xff]
    %v51 = vld [vmem:[%s0 + $0x18] sm:$0xff]
    %v52 = vld [vmem:[%s0 + $0x20] sm:$0xff]
    %v53 = vld [vmem:[%s0 + $0x28] sm:$0xff]
    %v54 = vld [vmem:[%s0 + $0x30] sm:$0xff]
    %v55 = vld [vmem:[%s0 + $0x38] sm:$0xff]
    %v56 = vld [vmem:[%s0 + $0x40] sm:$0xff]
    %v57 = vld [vmem:[%s0 + $0x48] sm:$0xff]
    %v58 = vld [vmem:[%s0 + $0x50] sm:$0xff]
    %v59 = vld [vmem:[%s0 + $0x58] sm:$0xff]
    %v60 = vld [vmem:[%s0 + $0x60] sm:$0xff]
    %v61 = vld [vmem:[%s0 + $0x68] sm:$0xff]
    %v62 = vld [vmem:[%s0 + $0x70] sm:$0xff]
    %v63 = vld [vmem:[%s0 + $0x78] sm:$0xff]
    %v64 = vld [vmem:[%s1] sm:$0xff]
    %v65 = vld [vmem:[%s1 + $0x8] sm:$0xff]
    %v66 = vld [vmem:[%s1 + $0x10] sm:$0xff]
    %v67 = vld [vmem:[%s1 + $0x18] sm:$0xff]
    %v68 = vld [vmem:[%s1 + $0x20] sm:$0xff]
    %v69 = vld [vmem:[%s1 + $0x28] sm:$0xff]
    %v70 = vld [vmem:[%s1 + $0x30] sm:$0xff]
    %v71 = vld [vmem:[%s1 + $0x38] sm:$0xff]
    %v72 = vld [vmem:[%s1 + $0x40] sm:$0xff]
    %v73 = vld [vmem:[%s1 + $0x48] sm:$0xff]
    %v74 = vld [vmem:[%s2] sm:$0x1]
    %v76 = vlaneseq
    %v77 = vshrl.u32 %v76, 7
    %v78 = vsub.s32 0, %v77
    %v79 = vrot.slane %v74, %v78
    %vm81 = vcmask 654336
    %v83 = vsel %vm81, %v48, 0
    %v86 = vsel %vm81, %v49, 0
    %v89 = vsel %vm81, %v50, 0
    %v92 = vsel %vm81, %v51, 0
    %v95 = vsel %vm81, %v52, 0
    %v98 = vsel %vm81, %v53, 0
    %v101 = vsel %vm81, %v54, 0
    %v104 = vsel %vm81, %v55, 0
    %v107 = vsel %vm81, %v56, 0
    %v110 = vsel %vm81, %v57, 0
    %v113 = vsel %vm81, %v58, 0
    %v116 = vsel %vm81, %v59, 0
    %v119 = vsel %vm81, %v60, 0
    %v122 = vsel %vm81, %v61, 0
    %v125 = vsel %vm81, %v62, 0
    %v128 = vsel %vm81, %v63, 0
    %130 = vmatprep.subr.mxu0 0.0
    %131 = vmatpush1.msra.mxu0 %v64
    %132 = vmatprep.subr.mxu0 0.0
    %133 = vmatpush1.msra.mxu0 %v65
    %134 = vmatprep.subr.mxu0 0.0
    %135 = vmatpush1.msra.mxu0 %v66
    %136 = vmatprep.subr.mxu0 0.0
    %137 = vmatpush1.msra.mxu0 %v67
    %138 = vmatprep.subr.mxu0 0.0
    %139 = vmatpush1.msra.mxu0 %v68
    %140 = vmatprep.subr.mxu0 0.0
    %141 = vmatpush1.msra.mxu0 %v69
    %142 = vmatprep.subr.mxu0 0.0
    %143 = vmatpush1.msra.mxu0 %v70
    %144 = vmatprep.subr.mxu0 0.0
    %145 = vmatpush1.msra.mxu0 %v71
    %146 = vmatprep.subr.mxu0 0.0
    %147 = vmatpush1.msra.mxu0 %v72
    %148 = vmatprep.subr.mxu0 0.0
    %149 = vmatpush1.msra.mxu0 %v73
    %150 = vmatprep.subr.mxu0 0.0
    %151 = vmatpush1.msra.mxu0 0.0
    %152 = vmatprep.subr.mxu0 0.0
    %153 = vmatpush1.msra.mxu0 0.0
    %154 = vmatprep.subr.mxu0 0.0
    %155 = vmatpush1.msra.mxu0 0.0
    %156 = vmatprep.subr.mxu0 0.0
    %157 = vmatpush1.msra.mxu0 0.0
    %158 = vmatprep.subr.mxu0 0.0
    %159 = vmatpush1.msra.mxu0 0.0
    %160 = vmatprep.subr.mxu0 0.0
    %161 = vmatpush1.msra.mxu0 0.0
    %162 = vmatprep.subr.mxu0 0.0
    %163 = vmatpush1.msra.mxu0 0.0
    %164 = vmatprep.subr.mxu0 0.0
    %165 = vmatpush1.msra.mxu0 0.0
    %166 = vmatprep.subr.mxu0 0.0
    %167 = vmatpush1.msra.mxu0 0.0
    %168 = vmatprep.subr.mxu0 0.0
    %169 = vmatpush1.msra.mxu0 0.0
    %170 = vmatprep.subr.mxu0 0.0
    %171 = vmatpush1.msra.mxu0 0.0
    %172 = vmatprep.subr.mxu0 0.0
    %173 = vmatpush1.msra.mxu0 0.0
    %174 = vmatprep.subr.mxu0 0.0
    %175 = vmatpush1.msra.mxu0 0.0
    %176 = vmatprep.subr.mxu0 0.0
    %177 = vmatpush1.msra.mxu0 0.0
    %178 = vmatprep.subr.mxu0 0.0
    %179 = vmatpush1.msra.mxu0 0.0
    %180 = vmatprep.subr.mxu0 0.0
    %181 = vmatpush1.msra.mxu0 0.0
    %182 = vmatprep.subr.mxu0 0.0
    %183 = vmatpush1.msra.mxu0 0.0
    %184 = vmatprep.subr.mxu0 0.0
    %185 = vmatpush1.msra.mxu0 0.0
    %186 = vmatprep.subr.mxu0 0.0
    %187 = vmatpush1.msra.mxu0 0.0
    %188 = vmatprep.subr.mxu0 0.0
    %189 = vmatpush1.msra.mxu0 0.0
    %190 = vmatprep.subr.mxu0 0.0
    %191 = vmatpush1.msra.mxu0 0.0
    %192 = vmatprep.subr.mxu0 0.0
    %193 = vmatpush1.msra.mxu0 0.0
    %194 = vmatprep.mubr.f32.mxu0 0.0
    %195 = vmatmul.mubr.f32.gmra.mrb[0].mxu0 %v83
    %v196 = vpop.f32.mrb[0].mxu0
    %v197 = vadd.f32 %v79, %v196
    %v198 = vpop.f32.mrb[0].mxu0
    %199 = vmatprep.mubr.f32.mxu0 0.0
    %200 = vmatmul.mubr.f32.gmra.mrb[0].mxu0 %v86
    %v201 = vpop.f32.mrb[0].mxu0
    %v202 = vadd.f32 %v79, %v201
    %v203 = vpop.f32.mrb[0].mxu0
    %204 = vmatprep.mubr.f32.mxu0 0.0
    %205 = vmatmul.mubr.f32.gmra.mrb[0].mxu0 %v89
    %v206 = vpop.f32.mrb[0].mxu0
    %v207 = vadd.f32 %v79, %v206
    %v208 = vpop.f32.mrb[0].mxu0
    %209 = vmatprep.mubr.f32.mxu0 0.0
    %210 = vmatmul.mubr.f32.gmra.mrb[0].mxu0 %v92
    %v211 = vpop.f32.mrb[0].mxu0
    %v212 = vadd.f32 %v79, %v211
    %v213 = vpop.f32.mrb[0].mxu0
    %214 = vmatprep.mubr.f32.mxu0 0.0
    %215 = vmatmul.mubr.f32.gmra.mrb[0].mxu0 %v95
    %v216 = vpop.f32.mrb[0].mxu0
    %v217 = vadd.f32 %v79, %v216
    %v218 = vpop.f32.mrb[0].mxu0
    %219 = vmatprep.mubr.f32.mxu0 0.0
    %220 = vmatmul.mubr.f32.gmra.mrb[0].mxu0 %v98
    %v221 = vpop.f32.mrb[0].mxu0
    %v222 = vadd.f32 %v79, %v221
    %v223 = vpop.f32.mrb[0].mxu0
    %224 = vmatprep.mubr.f32.mxu0 0.0
    %225 = vmatmul.mubr.f32.gmra.mrb[0].mxu0 %v101
    %v226 = vpop.f32.mrb[0].mxu0
    %v227 = vadd.f32 %v79, %v226
    %v228 = vpop.f32.mrb[0].mxu0
    %229 = vmatprep.mubr.f32.mxu0 0.0
    %230 = vmatmul.mubr.f32.gmra.mrb[0].mxu0 %v104
    %v231 = vpop.f32.mrb[0].mxu0
    %v232 = vadd.f32 %v79, %v231
    %v233 = vpop.f32.mrb[0].mxu0
    %234 = vmatprep.mubr.f32.mxu0 0.0
    %235 = vmatmul.mubr.f32.gmra.mrb[0].mxu0 %v107
    %v236 = vpop.f32.mrb[0].mxu0
    %v237 = vadd.f32 %v79, %v236
    %v238 = vpop.f32.mrb[0].mxu0
    %239 = vmatprep.mubr.f32.mxu0 0.0
    %240 = vmatmul.mubr.f32.gmra.mrb[0].mxu0 %v110
    %v241 = vpop.f32.mrb[0].mxu0
    %v242 = vadd.f32 %v79, %v241
    %v243 = vpop.f32.mrb[0].mxu0
    %244 = vmatprep.mubr.f32.mxu0 0.0
    %245 = vmatmul.mubr.f32.gmra.mrb[0].mxu0 %v113
    %v246 = vpop.f32.mrb[0].mxu0
    %v247 = vadd.f32 %v79, %v246
    %v248 = vpop.f32.mrb[0].mxu0
    %249 = vmatprep.mubr.f32.mxu0 0.0
    %250 = vmatmul.mubr.f32.gmra.mrb[0].mxu0 %v116
    %v251 = vpop.f32.mrb[0].mxu0
    %v252 = vadd.f32 %v79, %v251
    %v253 = vpop.f32.mrb[0].mxu0
    %254 = vmatprep.mubr.f32.mxu0 0.0
    %255 = vmatmul.mubr.f32.gmra.mrb[0].mxu0 %v119
    %v256 = vpop.f32.mrb[0].mxu0
    %v257 = vadd.f32 %v79, %v256
    %v258 = vpop.f32.mrb[0].mxu0
    %259 = vmatprep.mubr.f32.mxu0 0.0
    %260 = vmatmul.mubr.f32.gmra.mrb[0].mxu0 %v122
    %v261 = vpop.f32.mrb[0].mxu0
    %v262 = vadd.f32 %v79, %v261
    %v263 = vpop.f32.mrb[0].mxu0
    %264 = vmatprep.mubr.f32.mxu0 0.0
    %265 = vmatmul.mubr.f32.gmra.mrb[0].mxu0 %v125
    %v266 = vpop.f32.mrb[0].mxu0
    %v267 = vadd.f32 %v79, %v266
    %v268 = vpop.f32.mrb[0].mxu0
    %269 = vmatprep.mubr.f32.mxu0 0.0
    %270 = vmatmul.mubr.f32.gmra.mrb[0].mxu0 %v128
    %v271 = vpop.f32.mrb[0].mxu0
    %v272 = vadd.f32 %v79, %v271
    %v273 = vpop.f32.mrb[0].mxu0
    %274 = vdwg.mxu0
    %v275 = vmax.f32 %v197, 0.0
    %v276 = vmax.f32 %v202, 0.0
    %v277 = vmax.f32 %v207, 0.0
    %v278 = vmax.f32 %v212, 0.0
    %v279 = vmax.f32 %v217, 0.0
    %v280 = vmax.f32 %v222, 0.0
    %v281 = vmax.f32 %v227, 0.0
    %v282 = vmax.f32 %v232, 0.0
    %v283 = vmax.f32 %v237, 0.0
    %v284 = vmax.f32 %v242, 0.0
    %v285 = vmax.f32 %v247, 0.0
    %v286 = vmax.f32 %v252, 0.0
    %v287 = vmax.f32 %v257, 0.0
    %v288 = vmax.f32 %v262, 0.0
    %v289 = vmax.f32 %v267, 0.0
    %v290 = vmax.f32 %v272, 0.0
    %v291 = vld [vmem:[%s3] sm:$0xff]
    %v292 = vld [vmem:[%s3 + $0x8] sm:$0xff]
    %v293 = vld [vmem:[%s3 + $0x10] sm:$0xff]
    %v294 = vld [vmem:[%s3 + $0x18] sm:$0xff]
    %v295 = vld [vmem:[%s3 + $0x20] sm:$0xff]
    %v296 = vld [vmem:[%s3 + $0x28] sm:$0xff]
    %v297 = vld [vmem:[%s3 + $0x30] sm:$0xff]
    %v298 = vld [vmem:[%s3 + $0x38] sm:$0xff]
    %v299 = vld [vmem:[%s3 + $0x40] sm:$0xff]
    %v300 = vld [vmem:[%s3 + $0x48] sm:$0xff]
    %v301 = vld [vmem:[%s3 + $0x50] sm:$0xff]
    %v302 = vld [vmem:[%s3 + $0x58] sm:$0xff]
    %v303 = vld [vmem:[%s3 + $0x60] sm:$0xff]
    %v304 = vld [vmem:[%s3 + $0x68] sm:$0xff]
    %v305 = vld [vmem:[%s3 + $0x70] sm:$0xff]
    %v306 = vld [vmem:[%s3 + $0x78] sm:$0xff]
    %v307 = vld [vmem:[%s4] sm:$0x1]
    %v309 = vlaneseq
    %v310 = vshrl.u32 %v309, 7
    %v311 = vsub.s32 0, %v310
    %v312 = vrot.slane %v307, %v311
    %314 = vmatprep.subr.mxu0 0.0
    %315 = vmatpush1.msra.mxu0 %v291
    %316 = vmatprep.subr.mxu0 0.0
    %317 = vmatpush1.msra.mxu0 %v292
    %318 = vmatprep.subr.mxu0 0.0
    %319 = vmatpush1.msra.mxu0 %v293
    %320 = vmatprep.subr.mxu0 0.0
    %321 = vmatpush1.msra.mxu0 %v294
    %322 = vmatprep.subr.mxu0 0.0
    %323 = vmatpush1.msra.mxu0 %v295
    %324 = vmatprep.subr.mxu0 0.0
    %325 = vmatpush1.msra.mxu0 %v296
    %326 = vmatprep.subr.mxu0 0.0
    %327 = vmatpush1.msra.mxu0 %v297
    %328 = vmatprep.subr.mxu0 0.0
    %329 = vmatpush1.msra.mxu0 %v298
    %330 = vmatprep.subr.mxu0 0.0
    %331 = vmatpush1.msra.mxu0 %v299
    %332 = vmatprep.subr.mxu0 0.0
    %333 = vmatpush1.msra.mxu0 %v300
    %334 = vmatprep.subr.mxu0 0.0
    %335 = vmatpush1.msra.mxu0 %v301
    %336 = vmatprep.subr.mxu0 0.0
    %337 = vmatpush1.msra.mxu0 %v302
    %338 = vmatprep.subr.mxu0 0.0
    %339 = vmatpush1.msra.mxu0 %v303
    %340 = vmatprep.subr.mxu0 0.0
    %341 = vmatpush1.msra.mxu0 %v304
    %342 = vmatprep.subr.mxu0 0.0
    %343 = vmatpush1.msra.mxu0 %v305
    %344 = vmatprep.subr.mxu0 0.0
    %345 = vmatpush1.msra.mxu0 %v306
    %346 = vmatprep.subr.mxu0 0.0
    %347 = vmatpush1.msra.mxu0 0.0
    %348 = vmatprep.subr.mxu0 0.0
    %349 = vmatpush1.msra.mxu0 0.0
    %350 = vmatprep.subr.mxu0 0.0
    %351 = vmatpush1.msra.mxu0 0.0
    %352 = vmatprep.subr.mxu0 0.0
    %353 = vmatpush1.msra.mxu0 0.0
    %354 = vmatprep.subr.mxu0 0.0
    %355 = vmatpush1.msra.mxu0 0.0
    %356 = vmatprep.subr.mxu0 0.0
    %357 = vmatpush1.msra.mxu0 0.0
    %358 = vmatprep.subr.mxu0 0.0
    %359 = vmatpush1.msra.mxu0 0.0
    %360 = vmatprep.subr.mxu0 0.0
    %361 = vmatpush1.msra.mxu0 0.0
    %362 = vmatprep.subr.mxu0 0.0
    %363 = vmatpush1.msra.mxu0 0.0
    %364 = vmatprep.subr.mxu0 0.0
    %365 = vmatpush1.msra.mxu0 0.0
    %366 = vmatprep.subr.mxu0 0.0
    %367 = vmatpush1.msra.mxu0 0.0
    %368 = vmatprep.subr.mxu0 0.0
    %369 = vmatpush1.msra.mxu0 0.0
    %370 = vmatprep.subr.mxu0 0.0
    %371 = vmatpush1.msra.mxu0 0.0
    %372 = vmatprep.subr.mxu0 0.0
    %373 = vmatpush1.msra.mxu0 0.0
    %374 = vmatprep.subr.mxu0 0.0
    %375 = vmatpush1.msra.mxu0 0.0
    %376 = vmatprep.subr.mxu0 0.0
    %377 = vmatpush1.msra.mxu0 0.0
    %378 = vmatprep.mubr.f32.mxu0 0.0
    %379 = vmatmul.mubr.f32.gmra.mrb[0].mxu0 %v275
    %v380 = vpop.f32.mrb[0].mxu0
    %v381 = vadd.f32 %v312, %v380
    %v382 = vpop.f32.mrb[0].mxu0
    %383 = vmatprep.mubr.f32.mxu0 0.0
    %384 = vmatmul.mubr.f32.gmra.mrb[0].mxu0 %v276
    %v385 = vpop.f32.mrb[0].mxu0
    %v386 = vadd.f32 %v312, %v385
    %v387 = vpop.f32.mrb[0].mxu0
    %388 = vmatprep.mubr.f32.mxu0 0.0
    %389 = vmatmul.mubr.f32.gmra.mrb[0].mxu0 %v277
    %v390 = vpop.f32.mrb[0].mxu0
    %v391 = vadd.f32 %v312, %v390
    %v392 = vpop.f32.mrb[0].mxu0
    %393 = vmatprep.mubr.f32.mxu0 0.0
    %394 = vmatmul.mubr.f32.gmra.mrb[0].mxu0 %v278
    %v395 = vpop.f32.mrb[0].mxu0
    %v396 = vadd.f32 %v312, %v395
    %v397 = vpop.f32.mrb[0].mxu0
    %398 = vmatprep.mubr.f32.mxu0 0.0
    %399 = vmatmul.mubr.f32.gmra.mrb[0].mxu0 %v279
    %v400 = vpop.f32.mrb[0].mxu0
    %v401 = vadd.f32 %v312, %v400
    %v402 = vpop.f32.mrb[0].mxu0
    %403 = vmatprep.mubr.f32.mxu0 0.0
    %404 = vmatmul.mubr.f32.gmra.mrb[0].mxu0 %v280
    %v405 = vpop.f32.mrb[0].mxu0
    %v406 = vadd.f32 %v312, %v405
    %v407 = vpop.f32.mrb[0].mxu0
    %408 = vmatprep.mubr.f32.mxu0 0.0
    %409 = vmatmul.mubr.f32.gmra.mrb[0].mxu0 %v281
    %v410 = vpop.f32.mrb[0].mxu0
    %v411 = vadd.f32 %v312, %v410
    %v412 = vpop.f32.mrb[0].mxu0
    %413 = vmatprep.mubr.f32.mxu0 0.0
    %414 = vmatmul.mubr.f32.gmra.mrb[0].mxu0 %v282
    %v415 = vpop.f32.mrb[0].mxu0
    %v416 = vadd.f32 %v312, %v415
    %v417 = vpop.f32.mrb[0].mxu0
    %418 = vmatprep.mubr.f32.mxu0 0.0
    %419 = vmatmul.mubr.f32.gmra.mrb[0].mxu0 %v283
    %v420 = vpop.f32.mrb[0].mxu0
    %v421 = vadd.f32 %v312, %v420
    %v422 = vpop.f32.mrb[0].mxu0
    %423 = vmatprep.mubr.f32.mxu0 0.0
    %424 = vmatmul.mubr.f32.gmra.mrb[0].mxu0 %v284
    %v425 = vpop.f32.mrb[0].mxu0
    %v426 = vadd.f32 %v312, %v425
    %v427 = vpop.f32.mrb[0].mxu0
    %428 = vmatprep.mubr.f32.mxu0 0.0
    %429 = vmatmul.mubr.f32.gmra.mrb[0].mxu0 %v285
    %v430 = vpop.f32.mrb[0].mxu0
    %v431 = vadd.f32 %v312, %v430
    %v432 = vpop.f32.mrb[0].mxu0
    %433 = vmatprep.mubr.f32.mxu0 0.0
    %434 = vmatmul.mubr.f32.gmra.mrb[0].mxu0 %v286
    %v435 = vpop.f32.mrb[0].mxu0
    %v436 = vadd.f32 %v312, %v435
    %v437 = vpop.f32.mrb[0].mxu0
    %438 = vmatprep.mubr.f32.mxu0 0.0
    %439 = vmatmul.mubr.f32.gmra.mrb[0].mxu0 %v287
    %v440 = vpop.f32.mrb[0].mxu0
    %v441 = vadd.f32 %v312, %v440
    %v442 = vpop.f32.mrb[0].mxu0
    %443 = vmatprep.mubr.f32.mxu0 0.0
    %444 = vmatmul.mubr.f32.gmra.mrb[0].mxu0 %v288
    %v445 = vpop.f32.mrb[0].mxu0
    %v446 = vadd.f32 %v312, %v445
    %v447 = vpop.f32.mrb[0].mxu0
    %448 = vmatprep.mubr.f32.mxu0 0.0
    %449 = vmatmul.mubr.f32.gmra.mrb[0].mxu0 %v289
    %v450 = vpop.f32.mrb[0].mxu0
    %v451 = vadd.f32 %v312, %v450
    %v452 = vpop.f32.mrb[0].mxu0
    %453 = vmatprep.mubr.f32.mxu0 0.0
    %454 = vmatmul.mubr.f32.gmra.mrb[0].mxu0 %v290
    %v455 = vpop.f32.mrb[0].mxu0
    %v456 = vadd.f32 %v312, %v455
    %v457 = vpop.f32.mrb[0].mxu0
    %458 = vdwg.mxu0
    %v459 = vtanh.pop %v381
    %v460 = vtanh.pop %v386
    %v461 = vtanh.pop %v391
    %v462 = vtanh.pop %v396
    %v463 = vtanh.pop %v401
    %v464 = vtanh.pop %v406
    %v465 = vtanh.pop %v411
    %v466 = vtanh.pop %v416
    %v467 = vtanh.pop %v421
    %v468 = vtanh.pop %v426
    %v469 = vtanh.pop %v431
    %v470 = vtanh.pop %v436
    %v471 = vtanh.pop %v441
    %v472 = vtanh.pop %v446
    %v473 = vtanh.pop %v451
    %v474 = vtanh.pop %v456
    %v475 = vld [vmem:[#allocation3] sm:$0xff]
    %v476 = vld [vmem:[#allocation3 + $0x8] sm:$0xff]
    %v477 = vld [vmem:[#allocation3 + $0x10] sm:$0xff]
    %v478 = vld [vmem:[#allocation3 + $0x18] sm:$0xff]
    %v479 = vld [vmem:[#allocation3 + $0x20] sm:$0xff]
    %v480 = vld [vmem:[#allocation3 + $0x28] sm:$0xff]
    %v481 = vld [vmem:[#allocation3 + $0x30] sm:$0xff]
    %v482 = vld [vmem:[#allocation3 + $0x38] sm:$0xff]
    %v483 = vld [vmem:[#allocation3 + $0x40] sm:$0xff]
    %v484 = vld [vmem:[#allocation3 + $0x48] sm:$0xff]
    %v485 = vld [vmem:[#allocation3 + $0x50] sm:$0xff]
    %v486 = vld [vmem:[#allocation3 + $0x58] sm:$0xff]
    %v487 = vld [vmem:[#allocation3 + $0x60] sm:$0xff]
    %v488 = vld [vmem:[#allocation3 + $0x68] sm:$0xff]
    %v489 = vld [vmem:[#allocation3 + $0x70] sm:$0xff]
    %v490 = vld [vmem:[#allocation3 + $0x78] sm:$0xff]
    %v491 = vld [vmem:[%s6] sm:$0x1]
    %v493 = vlaneseq
    %v494 = vshrl.u32 %v493, 7
    %v495 = vsub.s32 0, %v494
    %v496 = vrot.slane %v491, %v495
    %498 = vmatprep.subr.mxu0 0.0
    %499 = vmatpush1.msra.mxu0 %v475
    %500 = vmatprep.subr.mxu0 0.0
    %501 = vmatpush1.msra.mxu0 %v476
    %502 = vmatprep.subr.mxu0 0.0
    %503 = vmatpush1.msra.mxu0 %v477
    %504 = vmatprep.subr.mxu0 0.0
    %505 = vmatpush1.msra.mxu0 %v478
    %506 = vmatprep.subr.mxu0 0.0
    %507 = vmatpush1.msra.mxu0 %v479
    %508 = vmatprep.subr.mxu0 0.0
    %509 = vmatpush1.msra.mxu0 %v480
    %510 = vmatprep.subr.mxu0 0.0
    %511 = vmatpush1.msra.mxu0 %v481
    %512 = vmatprep.subr.mxu0 0.0
    %513 = vmatpush1.msra.mxu0 %v482
    %514 = vmatprep.subr.mxu0 0.0
    %515 = vmatpush1.msra.mxu0 %v483
    %516 = vmatprep.subr.mxu0 0.0
    %517 = vmatpush1.msra.mxu0 %v484
    %518 = vmatprep.subr.mxu0 0.0
    %519 = vmatpush1.msra.mxu0 %v485
    %520 = vmatprep.subr.mxu0 0.0
    %521 = vmatpush1.msra.mxu0 %v486
    %522 = vmatprep.subr.mxu0 0.0
    %523 = vmatpush1.msra.mxu0 %v487
    %524 = vmatprep.subr.mxu0 0.0
    %525 = vmatpush1.msra.mxu0 %v488
    %526 = vmatprep.subr.mxu0 0.0
    %527 = vmatpush1.msra.mxu0 %v489
    %528 = vmatprep.subr.mxu0 0.0
    %529 = vmatpush1.msra.mxu0 %v490
    %530 = vmatprep.subr.mxu0 0.0
    %531 = vmatpush1.msra.mxu0 0.0
    %532 = vmatprep.subr.mxu0 0.0
    %533 = vmatpush1.msra.mxu0 0.0
    %534 = vmatprep.subr.mxu0 0.0
    %535 = vmatpush1.msra.mxu0 0.0
    %536 = vmatprep.subr.mxu0 0.0
    %537 = vmatpush1.msra.mxu0 0.0
    %538 = vmatprep.subr.mxu0 0.0
    %539 = vmatpush1.msra.mxu0 0.0
    %540 = vmatprep.subr.mxu0 0.0
    %541 = vmatpush1.msra.mxu0 0.0
    %542 = vmatprep.subr.mxu0 0.0
    %543 = vmatpush1.msra.mxu0 0.0
    %544 = vmatprep.subr.mxu0 0.0
    %545 = vmatpush1.msra.mxu0 0.0
    %546 = vmatprep.subr.mxu0 0.0
    %547 = vmatpush1.msra.mxu0 0.0
    %548 = vmatprep.subr.mxu0 0.0
    %549 = vmatpush1.msra.mxu0 0.0
    %550 = vmatprep.subr.mxu0 0.0
    %551 = vmatpush1.msra.mxu0 0.0
    %552 = vmatprep.subr.mxu0 0.0
    %553 = vmatpush1.msra.mxu0 0.0
    %554 = vmatprep.subr.mxu0 0.0
    %555 = vmatpush1.msra.mxu0 0.0
    %556 = vmatprep.subr.mxu0 0.0
    %557 = vmatpush1.msra.mxu0 0.0
    %558 = vmatprep.subr.mxu0 0.0
    %559 = vmatpush1.msra.mxu0 0.0
    %560 = vmatprep.subr.mxu0 0.0
    %561 = vmatpush1.msra.mxu0 0.0
    %562 = vmatprep.mubr.f32.mxu0 0.0
    %563 = vmatmul.mubr.f32.gmra.mrb[0].mxu0 %v459
    %v564 = vpop.f32.mrb[0].mxu0
    %v565 = vadd.f32 %v496, %v564
    %v566 = vpop.f32.mrb[0].mxu0
    %567 = vmatprep.mubr.f32.mxu0 0.0
    %568 = vmatmul.mubr.f32.gmra.mrb[0].mxu0 %v460
    %v569 = vpop.f32.mrb[0].mxu0
    %v570 = vadd.f32 %v496, %v569
    %v571 = vpop.f32.mrb[0].mxu0
    %572 = vmatprep.mubr.f32.mxu0 0.0
    %573 = vmatmul.mubr.f32.gmra.mrb[0].mxu0 %v461
    %v574 = vpop.f32.mrb[0].mxu0
    %v575 = vadd.f32 %v496, %v574
    %v576 = vpop.f32.mrb[0].mxu0
    %577 = vmatprep.mubr.f32.mxu0 0.0
    %578 = vmatmul.mubr.f32.gmra.mrb[0].mxu0 %v462
    %v579 = vpop.f32.mrb[0].mxu0
    %v580 = vadd.f32 %v496, %v579
    %v581 = vpop.f32.mrb[0].mxu0
    %582 = vmatprep.mubr.f32.mxu0 0.0
    %583 = vmatmul.mubr.f32.gmra.mrb[0].mxu0 %v463
    %v584 = vpop.f32.mrb[0].mxu0
    %v585 = vadd.f32 %v496, %v584
    %v586 = vpop.f32.mrb[0].mxu0
    %587 = vmatprep.mubr.f32.mxu0 0.0
    %588 = vmatmul.mubr.f32.gmra.mrb[0].mxu0 %v464
    %v589 = vpop.f32.mrb[0].mxu0
    %v590 = vadd.f32 %v496, %v589
    %v591 = vpop.f32.mrb[0].mxu0
    %592 = vmatprep.mubr.f32.mxu0 0.0
    %593 = vmatmul.mubr.f32.gmra.mrb[0].mxu0 %v465
    %v594 = vpop.f32.mrb[0].mxu0
    %v595 = vadd.f32 %v496, %v594
    %v596 = vpop.f32.mrb[0].mxu0
    %597 = vmatprep.mubr.f32.mxu0 0.0
    %598 = vmatmul.mubr.f32.gmra.mrb[0].mxu0 %v466
    %v599 = vpop.f32.mrb[0].mxu0
    %v600 = vadd.f32 %v496, %v599
    %v601 = vpop.f32.mrb[0].mxu0
    %602 = vmatprep.mubr.f32.mxu0 0.0
    %603 = vmatmul.mubr.f32.gmra.mrb[0].mxu0 %v467
    %v604 = vpop.f32.mrb[0].mxu0
    %v605 = vadd.f32 %v496, %v604
    %v606 = vpop.f32.mrb[0].mxu0
    %607 = vmatprep.mubr.f32.mxu0 0.0
    %608 = vmatmul.mubr.f32.gmra.mrb[0].mxu0 %v468
    %v609 = vpop.f32.mrb[0].mxu0
    %v610 = vadd.f32 %v496, %v609
    %v611 = vpop.f32.mrb[0].mxu0
    %612 = vmatprep.mubr.f32.mxu0 0.0
    %613 = vmatmul.mubr.f32.gmra.mrb[0].mxu0 %v469
    %v614 = vpop.f32.mrb[0].mxu0
    %v615 = vadd.f32 %v496, %v614
    %v616 = vpop.f32.mrb[0].mxu0
    %617 = vmatprep.mubr.f32.mxu0 0.0
    %618 = vmatmul.mubr.f32.gmra.mrb[0].mxu0 %v470
    %v619 = vpop.f32.mrb[0].mxu0
    %v620 = vadd.f32 %v496, %v619
    %v621 = vpop.f32.mrb[0].mxu0
    %622 = vmatprep.mubr.f32.mxu0 0.0
    %623 = vmatmul.mubr.f32.gmra.mrb[0].mxu0 %v471
    %v624 = vpop.f32.mrb[0].mxu0
    %v625 = vadd.f32 %v496, %v624
    %v626 = vpop.f32.mrb[0].mxu0
    %627 = vmatprep.mubr.f32.mxu0 0.0
    %628 = vmatmul.mubr.f32.gmra.mrb[0].mxu0 %v472
    %v629 = vpop.f32.mrb[0].mxu0
    %v630 = vadd.f32 %v496, %v629
    %v631 = vpop.f32.mrb[0].mxu0
    %632 = vmatprep.mubr.f32.mxu0 0.0
    %633 = vmatmul.mubr.f32.gmra.mrb[0].mxu0 %v473
    %v634 = vpop.f32.mrb[0].mxu0
    %v635 = vadd.f32 %v496, %v634
    %v636 = vpop.f32.mrb[0].mxu0
    %637 = vmatprep.mubr.f32.mxu0 0.0
    %638 = vmatmul.mubr.f32.gmra.mrb[0].mxu0 %v474
    %v639 = vpop.f32.mrb[0].mxu0
    %v640 = vadd.f32 %v496, %v639
    %v641 = vpop.f32.mrb[0].mxu0
    %642 = vdwg.mxu0
    %v643 = vmax.f32 %v565, 0.0
    %v644 = vmax.f32 %v570, 0.0
    %v645 = vmax.f32 %v575, 0.0
    %v646 = vmax.f32 %v580, 0.0
    %v647 = vmax.f32 %v585, 0.0
    %v648 = vmax.f32 %v590, 0.0
    %v649 = vmax.f32 %v595, 0.0
    %v650 = vmax.f32 %v600, 0.0
    %v651 = vmax.f32 %v605, 0.0
    %v652 = vmax.f32 %v610, 0.0
    %v653 = vmax.f32 %v615, 0.0
    %v654 = vmax.f32 %v620, 0.0
    %v655 = vmax.f32 %v625, 0.0
    %v656 = vmax.f32 %v630, 0.0
    %v657 = vmax.f32 %v635, 0.0
    %v658 = vmax.f32 %v640, 0.0
    %v659 = vld [vmem:[%s7] sm:$0x1]
    %s660 = sld [smem:[#allocation2]]
    %v661 = vstv %s660
    %662 = vmatprep.subr.mxu0 0.0
    %663 = vmatpush1.xpose.msra.mxu0 %v643
    %664 = vmatprep.subr.mxu0 0.0
    %665 = vmatpush1.xpose.msra.mxu0 %v644
    %666 = vmatprep.subr.mxu0 0.0
    %667 = vmatpush1.xpose.msra.mxu0 %v645
    %668 = vmatprep.subr.mxu0 0.0
    %669 = vmatpush1.xpose.msra.mxu0 %v646
    %670 = vmatprep.subr.mxu0 0.0
    %671 = vmatpush1.xpose.msra.mxu0 %v647
    %672 = vmatprep.subr.mxu0 0.0
    %673 = vmatpush1.xpose.msra.mxu0 %v648
    %674 = vmatprep.subr.mxu0 0.0
    %675 = vmatpush1.xpose.msra.mxu0 %v649
    %676 = vmatprep.subr.mxu0 0.0
    %677 = vmatpush1.xpose.msra.mxu0 %v650
    %678 = vmatprep.subr.mxu0 0.0
    %679 = vmatpush1.xpose.msra.mxu0 %v651
    %680 = vmatprep.subr.mxu0 0.0
    %681 = vmatpush1.xpose.msra.mxu0 %v652
    %682 = vmatprep.subr.mxu0 0.0
    %683 = vmatpush1.xpose.msra.mxu0 %v653
    %684 = vmatprep.subr.mxu0 0.0
    %685 = vmatpush1.xpose.msra.mxu0 %v654
    %686 = vmatprep.subr.mxu0 0.0
    %687 = vmatpush1.xpose.msra.mxu0 %v655
    %688 = vmatprep.subr.mxu0 0.0
    %689 = vmatpush1.xpose.msra.mxu0 %v656
    %690 = vmatprep.subr.mxu0 0.0
    %691 = vmatpush1.xpose.msra.mxu0 %v657
    %692 = vmatprep.subr.mxu0 0.0
    %693 = vmatpush1.xpose.msra.mxu0 %v658
    %694 = vmatprep.subr.mxu0 0.0
    %695 = vmatpush1.xpose.msra.mxu0 0.0
    %696 = vmatprep.subr.mxu0 0.0
    %697 = vmatpush1.xpose.msra.mxu0 0.0
    %698 = vmatprep.subr.mxu0 0.0
    %699 = vmatpush1.xpose.msra.mxu0 0.0
    %700 = vmatprep.subr.mxu0 0.0
    %701 = vmatpush1.xpose.msra.mxu0 0.0
    %702 = vmatprep.subr.mxu0 0.0
    %703 = vmatpush1.xpose.msra.mxu0 0.0
    %704 = vmatprep.subr.mxu0 0.0
    %705 = vmatpush1.xpose.msra.mxu0 0.0
    %706 = vmatprep.subr.mxu0 0.0
    %707 = vmatpush1.xpose.msra.mxu0 0.0
    %708 = vmatprep.subr.mxu0 0.0
    %709 = vmatpush1.xpose.msra.mxu0 0.0
    %710 = vmatprep.subr.mxu0 0.0
    %711 = vmatpush1.xpose.msra.mxu0 0.0
    %712 = vmatprep.subr.mxu0 0.0
    %713 = vmatpush1.xpose.msra.mxu0 0.0
    %714 = vmatprep.subr.mxu0 0.0
    %715 = vmatpush1.xpose.msra.mxu0 0.0
    %716 = vmatprep.subr.mxu0 0.0
    %717 = vmatpush1.xpose.msra.mxu0 0.0
    %718 = vmatprep.subr.mxu0 0.0
    %719 = vmatpush1.xpose.msra.mxu0 0.0
    %720 = vmatprep.subr.mxu0 0.0
    %721 = vmatpush1.xpose.msra.mxu0 0.0
    %722 = vmatprep.subr.mxu0 0.0
    %723 = vmatpush1.xpose.msra.mxu0 0.0
    %724 = vmatprep.subr.mxu0 0.0
    %725 = vmatpush1.xpose.msra.mxu0 0.0
    %726 = vmatprep.mubr.f32.mxu0 0.0
    %727 = vmatmul.mubr.f32.gmra.mrb[0].mxu0 %v659
    %v728 = vpop.f32.mrb[0].mxu0
    %v729 = vadd.f32 %v661, %v728
    %v730 = vpop.f32.mrb[0].mxu0
    %731 = vdwg.mxu0
    %v732 = vxor.u32 %v729, 2147483648
    %v733 = vmul.f32 %v732, 1.442695
    %v734 = vpow.pop %v733
    %v735 = vadd.f32 %v734, 1.0
    %v736 = vrcp.pop %v735
    %v737 = vmul.f32 1.0, %v736
    %738 = vst [vmem:[#allocation6] sm:$0x1] %v737
    // Predicated region
    $region42: #{tpu_custom_call.1} parent=1 // pred_check
      _
    $region43: #{tpu_custom_call.1} parent=1 // pred_check_branch
      %740 = sbr.rel (0) target = $region45
    $region44: #{tpu_custom_call.1} parent=1 // pred_region
      %s742 = ssub.s32 16, 16
      %743 = vsyncadd [#allocation5], %s742
      %s745 = sshll.u32 [#allocation6], 4
      %s746 = int_to_ptr.vmem [resolvable:$true] %s745
      %748 = dma.vmem_to_hbm [thread:$0]  %s746, 16, %s9, [#allocation5]
    $region45: #{tpu_custom_call.1} parent=1 // pred_fallthru
      _
    // Predicated region
    $region46: #{tpu_custom_call.1} parent=1 // pred_check
      _
    $region47: #{tpu_custom_call.1} parent=1 // pred_check_branch
      %750 = sbr.rel (0) target = $region49
    $region48: #{tpu_custom_call.1} parent=1 // pred_region
      %751 = dma.done [#allocation5], 16
    $region49: #{tpu_custom_call.1} parent=1 // pred_fallthru
      _
    %752 = vsyncpa [#allocation4], 1
    %753 = vsyncpa [#allocation5], 1

</llo_original>
